<compile_context>
chip_gen: v7x
topology: tpu7x:2x2x1
jax: 0.10.0
libtpu: 0.0.40
codegen_flags: <defaults>
</compile_context>

<pallas_src>
import functools

import jax
import jax.numpy as jnp
from jax.experimental import pallas as pl
from jax.experimental.pallas import tpu as pltpu

NUM_CORES = 2  # leading "parallel" grid axis; v7x has 2 TensorCores per chip.


def varub_kernel(needs_mask, n_ref, x_ref, w1_ref, b1_ref, w2_ref, b2_ref,
                 out_ref, acc_ref):
    i = pl.program_id(1)

    @pl.when(i == 0)
    def _():
        acc_ref[...] = jnp.zeros_like(acc_ref)

    # In-kernel bf16 cast of the streamed f32 x tile (full-rate MXU operands).
    x = x_ref[...].astype(jnp.bfloat16)                           # [T, x_dim]

    # Fused layer 1: one matmul produces [mu-hidden | logvar-hidden].
    h = jnp.dot(x, w1_ref[...], preferred_element_type=jnp.float32) + b1_ref[...]
    h = jnp.maximum(h, 0.0)                                       # [T, 2*h2] f32

    # Fused layer 2 (block-diagonal weights): one matmul -> [mu | pre_tanh].
    z = jnp.dot(h.astype(w2_ref.dtype), w2_ref[...],
                preferred_element_type=jnp.float32) + b2_ref[...]   # [T, 2*y_dim]

    y_dim = z.shape[-1] // 2
    mu = z[:, :y_dim]
    logvar = jnp.tanh(z[:, y_dim:])
    term = mu * mu + jnp.exp(logvar) - 1.0 - logvar               # [T, y_dim] f32

    if needs_mask:
        # Only tiles that can contain invalid rows (ragged last real tile, or a
        # fully-masked duplicate tile from the 2-way core split) pay for the mask.
        tile_n = x_ref.shape[0]
        n_rows = n_ref[0]
        g = pl.program_id(0) * pl.num_programs(1) + i             # global tile index
        tile_is_full = (g + 1) * tile_n <= n_rows

        @pl.when(tile_is_full)
        def _():
            acc_ref[...] += term

        @pl.when(jnp.logical_not(tile_is_full))
        def _():
            row_ids = g * tile_n + jax.lax.broadcasted_iota(
                jnp.int32, (tile_n, 1), 0)
            acc_ref[...] += jnp.where(row_ids < n_rows, term, 0.0)
    else:
        acc_ref[...] += term

    @pl.when(i == pl.num_programs(1) - 1)
    def _():
        # Single cross-lane + sublane reduce per core (kept 2-D: lane reduce with
        # keepdims, then sublane reduce), splatted over one (8,128) output tile.
        total = jnp.sum(acc_ref[...].sum(axis=-1, keepdims=True))
        out_ref[...] = jnp.full(out_ref.shape, total, jnp.float32)


def varub_forward(x_samples, y_samples, params, *, tile_n=4096):
    """VarUB.forward. `y_samples` is accepted for API parity but is unused."""
    del y_samples  # VarUB's forward does not depend on y_samples.
    w1m, b1m, w2m, b2m, w1v, b1v, w2v, b2v = params
    n, x_dim = x_samples.shape
    h2 = w1m.shape[1]
    y_dim = w2m.shape[1]

    # ---- fuse the mu / logvar branches (done once, outside the kernel) ----
    # NOTE: block-diagonal w2 is free while 2*h2 / 2*y_dim are far below the MXU
    # tile; split layer 2 back into two matmuls if h2 or y_dim grow to >=128.
    w1 = jnp.concatenate([w1m, w1v], axis=1).astype(jnp.bfloat16)   # [x_dim, 2*h2]
    b1 = jnp.concatenate([b1m, b1v], axis=1)                        # [1, 2*h2] f32
    zeros = jnp.zeros((h2, y_dim), jnp.float32)
    w2 = jnp.concatenate(
        [jnp.concatenate([w2m, zeros], axis=1),
         jnp.concatenate([zeros, w2v], axis=1)], axis=0).astype(jnp.bfloat16)
    b2 = jnp.concatenate([b2m, b2v], axis=1)                        # [1, 2*y_dim]

    # ---- row tiling: multiple of 8 sublanes; NO host-side pad/cast of x ----
    tile_n = max(8, min(tile_n, ((n + 7) // 8) * 8))
    tile_n = ((tile_n + 7) // 8) * 8
    num_tiles = pl.cdiv(n, tile_n)
    tpc = pl.cdiv(num_tiles, NUM_CORES)              # tiles per core
    # Masking is needed iff the last real tile is ragged or the core split creates
    # duplicate (fully masked) virtual tiles.
    needs_mask = (n % tile_n != 0) or (NUM_CORES * tpc != num_tiles)

    if NUM_CORES * tpc == num_tiles:
        x_map = lambda c, i, n_ref: (c * tpc + i, 0)              # affine fast path
    else:
        last_blk = num_tiles - 1
        x_map = lambda c, i, n_ref: (jnp.minimum(c * tpc + i, last_blk), 0)

    grid_spec = pltpu.PrefetchScalarGridSpec(
        num_scalar_prefetch=1,                                    # n_rows in SMEM
        grid=(NUM_CORES, tpc),
        in_specs=[
            # x: streamed f32 row tiles.  If xprof ever shows exposed x DMA on
            # v5e at large tile_n, add pipeline_mode=pl.Buffered(3) here.
            pl.BlockSpec((tile_n, x_dim), x_map),
            # weights / biases: VMEM-resident (constant index maps).
            pl.BlockSpec((x_dim, 2 * h2), lambda c, i, n_ref: (0, 0)),
            pl.BlockSpec((1, 2 * h2), lambda c, i, n_ref: (0, 0)),
            pl.BlockSpec((2 * h2, 2 * y_dim), lambda c, i, n_ref: (0, 0)),
            pl.BlockSpec((1, 2 * y_dim), lambda c, i, n_ref: (0, 0)),
        ],
        # Per-core partial sum, splatted over one (8,128) f32 tile (lane-dense,
        # always satisfies the (8,128) block constraint).
        out_specs=pl.BlockSpec((1, 8, 128), lambda c, i, n_ref: (c, 0, 0)),
        scratch_shapes=[pltpu.VMEM((tile_n, y_dim), jnp.float32)],  # vector acc
    )

    # Cost estimate counts only the non-zero halves of the block-diagonal w2.
    flops = 2 * n * x_dim * (2 * h2) + 4 * n * h2 * y_dim
    transcendentals = 2 * n * y_dim                               # tanh + exp
    bytes_accessed = (x_samples.size * x_samples.dtype.itemsize
                      + w1.size * 2 + w2.size * 2 + b1.size * 4 + b2.size * 4
                      + NUM_CORES * 8 * 128 * 4)

    partials = pl.pallas_call(
        functools.partial(varub_kernel, needs_mask),
        out_shape=jax.ShapeDtypeStruct((NUM_CORES, 8, 128), jnp.float32),
        grid_spec=grid_spec,
        compiler_params=pltpu.CompilerParams(
            dimension_semantics=("parallel", "arbitrary")),       # cores x running-sum
        cost_estimate=pl.CostEstimate(flops=flops,
                                      transcendentals=transcendentals,
                                      bytes_accessed=bytes_accessed),
    )(jnp.asarray([n], jnp.int32), x_samples, w1, b1, w2, b2)

    scale = 0.5 / (n * y_dim)
    return (partials[0, 0, 0] + partials[1, 0, 0]) * scale


def init_params(key, x_dim, y_dim, hidden_size):
    h2 = hidden_size // 2
    ks = jax.random.split(key, 8)
    scale = 0.1
    shapes = [(x_dim, h2), (1, h2), (h2, y_dim), (1, y_dim),
              (x_dim, h2), (1, h2), (h2, y_dim), (1, y_dim)]
    return tuple(scale * jax.random.normal(k, s, jnp.float32)
                 for k, s in zip(ks, shapes))


if __name__ == "__main__":
    # Small shapes consistent with the module; N is deliberately NOT a tile
    # multiple so the masking / clamping paths are exercised.
    N, x_dim, y_dim, hidden = 50, 32, 32, 32          # h2 = 16

    key = jax.random.PRNGKey(0)
    k_x, k_y, k_p, k_x2 = jax.random.split(key, 4)

    x = jax.random.normal(k_x, (N, x_dim), jnp.float32)
    y = jax.random.normal(k_y, (N, y_dim), jnp.float32)   # unused by VarUB.forward
    x2 = jax.random.normal(k_x2, (64, x_dim), jnp.float32)
    params = init_params(k_p, x_dim, y_dim, hidden)

    # Pure-JAX reference (same bf16 matmul operands, f32 accumulation).
    w1m, b1m, w2m, b2m, w1v, b1v, w2v, b2v = params

    def lin(a, w, b):
        return jnp.dot(a.astype(jnp.bfloat16), w.astype(jnp.bfloat16),
                       preferred_element_type=jnp.float32) + b

    def ref_varub(xs):
        mu_r = lin(jnp.maximum(lin(xs, w1m, b1m), 0.0), w2m, b2m)
        lv_r = jnp.tanh(lin(jnp.maximum(lin(xs, w1v, b1v), 0.0), w2v, b2v))
        return 0.5 * jnp.mean(mu_r ** 2 + jnp.exp(lv_r) - 1.0 - lv_r)

    # 1) Ragged multi-tile path (mask only on the last real tile) + 2-way core split.
    r1 = varub_forward(x, y, params, tile_n=16)
    # 2) Default tile size -> clamp path (one real ragged tile + fully-masked dup tile).
    r2 = varub_forward(x, y, params)
    # 3) No-mask fast path: N is a tile multiple and tiles split evenly per core.
    r3 = varub_forward(x2, y, params, tile_n=16)
    jax.block_until_ready((r1, r2, r3))

    ref1 = ref_varub(x)
    ref3 = ref_varub(x2)
    assert jnp.allclose(r1, ref1, atol=2e-3, rtol=2e-3), (r1, ref1)
    assert jnp.allclose(r2, ref1, atol=2e-3, rtol=2e-3), (r2, ref1)
    assert jnp.allclose(r3, ref3, atol=2e-3, rtol=2e-3), (r3, ref3)
    print("KERNEL_OK")
</pallas_src>

<mosaic_0001>
module attributes {stable_mosaic.version = 11 : i64} {
  func.func @varub_kernel(%arg0: i32, %arg1: i32, %arg2: memref<1xi32, #tpu.memory_space<smem>>, %arg3: memref<16x32xf32, #tpu.memory_space<vmem>>, %arg4: memref<32x32xbf16, #tpu.memory_space<vmem>>, %arg5: memref<1x32xf32, #tpu.memory_space<vmem>>, %arg6: memref<32x64xbf16, #tpu.memory_space<vmem>>, %arg7: memref<1x64xf32, #tpu.memory_space<vmem>>, %arg8: memref<1x8x128xf32, #tpu.memory_space<vmem>>, %arg9: memref<16x32xf32, #tpu.memory_space<vmem>>) attributes {dimension_semantics = [#tpu.dimension_semantics<parallel>, #tpu.dimension_semantics<arbitrary>], iteration_bounds = array<i64: 2, 2>, scalar_prefetch = 1 : i64, scratch_operands = 1 : i64, tpu.core_type = #tpu.core_type<tc>, window_params = [{transform_indices = @transform_0, window_bounds = array<i64: 16, 32>}, {pipeline_mode = #tpu.pipeline_mode<synchronous>, transform_indices = @transform_1, window_bounds = array<i64: 32, 32>}, {pipeline_mode = #tpu.pipeline_mode<synchronous>, transform_indices = @transform_2, window_bounds = array<i64: 1, 32>}, {pipeline_mode = #tpu.pipeline_mode<synchronous>, transform_indices = @transform_3, window_bounds = array<i64: 32, 64>}, {pipeline_mode = #tpu.pipeline_mode<synchronous>, transform_indices = @transform_4, window_bounds = array<i64: 1, 64>}, {transform_indices = @transform_5, window_bounds = array<i64: 1, 8, 128>}]} {
    %c0_i32 = arith.constant 0 : i32
    %0 = arith.cmpi eq, %arg1, %c0_i32 : i32
    %1 = arith.extui %0 : i1 to i32
    %c0_i32_0 = arith.constant 0 : i32
    %2 = arith.cmpi ne, %1, %c0_i32_0 : i32
    scf.if %2 {
      %cst_18 = arith.constant 0.000000e+00 : f32
      %41 = vector.broadcast %cst_18 : f32 to vector<16x32xf32>
      %c0_19 = arith.constant 0 : index
      %c0_20 = arith.constant 0 : index
      %42 = vector.load %arg9[%c0_19, %c0_20] : memref<16x32xf32, #tpu.memory_space<vmem>>, vector<16x32xf32>
      tpu.vector_store %arg9[%c0_19, %c0_20], %41 {strides = array<i32>} : memref<16x32xf32, #tpu.memory_space<vmem>>, vector<16x32xf32>,
    } else {
    }
    %c0 = arith.constant 0 : index
    %c0_1 = arith.constant 0 : index
    %3 = vector.load %arg3[%c0, %c0_1] : memref<16x32xf32, #tpu.memory_space<vmem>>, vector<16x32xf32>
    %4 = arith.truncf %3 : vector<16x32xf32> to vector<16x32xbf16>
    %c0_2 = arith.constant 0 : index
    %c0_3 = arith.constant 0 : index
    %5 = vector.load %arg4[%c0_2, %c0_3] : memref<32x32xbf16, #tpu.memory_space<vmem>>, vector<32x32xbf16>
    %cst = arith.constant dense<0.000000e+00> : vector<16x32xf32>
    %6 = tpu.matmul %4, %5, %cst {dimension_numbers = #tpu.dot_dimension_numbers<[1], [0], [0], [1], [0, 0, 1, 1], [], []>} : vector<16x32xbf16>, vector<32x32xbf16>, vector<16x32xf32> -> vector<16x32xf32>
    %c0_4 = arith.constant 0 : index
    %c0_5 = arith.constant 0 : index
    %7 = vector.load %arg5[%c0_4, %c0_5] : memref<1x32xf32, #tpu.memory_space<vmem>>, vector<1x32xf32>
    %8 = vector.broadcast %7 : vector<1x32xf32> to vector<16x32xf32>
    %9 = arith.addf %6, %8 : vector<16x32xf32>
    %cst_6 = arith.constant 0.000000e+00 : f32
    %10 = vector.broadcast %cst_6 : f32 to vector<16x32xf32>
    %11 = arith.maximumf %9, %10 : vector<16x32xf32>
    %12 = arith.truncf %11 : vector<16x32xf32> to vector<16x32xbf16>
    %c0_7 = arith.constant 0 : index
    %c0_8 = arith.constant 0 : index
    %13 = vector.load %arg6[%c0_7, %c0_8] : memref<32x64xbf16, #tpu.memory_space<vmem>>, vector<32x64xbf16>
    %cst_9 = arith.constant dense<0.000000e+00> : vector<16x64xf32>
    %14 = tpu.matmul %12, %13, %cst_9 {dimension_numbers = #tpu.dot_dimension_numbers<[1], [0], [0], [1], [0, 0, 1, 1], [], []>} : vector<16x32xbf16>, vector<32x64xbf16>, vector<16x64xf32> -> vector<16x64xf32>
    %c0_10 = arith.constant 0 : index
    %c0_11 = arith.constant 0 : index
    %15 = vector.load %arg7[%c0_10, %c0_11] : memref<1x64xf32, #tpu.memory_space<vmem>>, vector<1x64xf32>
    %16 = vector.broadcast %15 : vector<1x64xf32> to vector<16x64xf32>
    %17 = arith.addf %14, %16 : vector<16x64xf32>
    %18 = vector.extract_strided_slice %17 {offsets = [0, 0], sizes = [16, 32], strides = [1, 1]} : vector<16x64xf32> to vector<16x32xf32>
    %19 = vector.extract_strided_slice %17 {offsets = [0, 32], sizes = [16, 32], strides = [1, 1]} : vector<16x64xf32> to vector<16x32xf32>
    %20 = math.tanh %19 : vector<16x32xf32>
    %21 = arith.mulf %18, %18 : vector<16x32xf32>
    %22 = math.exp %20 : vector<16x32xf32>
    %23 = arith.addf %21, %22 : vector<16x32xf32>
    %cst_12 = arith.constant 1.000000e+00 : f32
    %24 = vector.broadcast %cst_12 : f32 to vector<16x32xf32>
    %25 = arith.subf %23, %24 : vector<16x32xf32>
    %26 = arith.subf %25, %20 : vector<16x32xf32>
    %c0_13 = arith.constant 0 : index
    %27 = memref.load %arg2[%c0_13] : memref<1xi32, #tpu.memory_space<smem>>
    %c2_i32 = arith.constant 2 : i32
    %28 = arith.muli %arg0, %c2_i32 : i32
    %29 = arith.addi %28, %arg1 : i32
    %c1_i32 = arith.constant 1 : i32
    %30 = arith.addi %29, %c1_i32 : i32
    %c16_i32 = arith.constant 16 : i32
    %31 = arith.muli %30, %c16_i32 : i32
    %32 = arith.cmpi sle, %31, %27 : i32
    %33 = arith.extui %32 : i1 to i32
    %c0_i32_14 = arith.constant 0 : i32
    %34 = arith.cmpi ne, %33, %c0_i32_14 : i32
    scf.if %34 {
      %c0_18 = arith.constant 0 : index
      %c0_19 = arith.constant 0 : index
      %41 = vector.load %arg9[%c0_18, %c0_19] : memref<16x32xf32, #tpu.memory_space<vmem>>, vector<16x32xf32>
      %42 = arith.addf %41, %26 : vector<16x32xf32>
      %c0_20 = arith.constant 0 : index
      %c0_21 = arith.constant 0 : index
      %43 = vector.load %arg9[%c0_20, %c0_21] : memref<16x32xf32, #tpu.memory_space<vmem>>, vector<16x32xf32>
      tpu.vector_store %arg9[%c0_20, %c0_21], %42 {strides = array<i32>} : memref<16x32xf32, #tpu.memory_space<vmem>>, vector<16x32xf32>,
    } else {
    }
    %true = arith.constant true
    %35 = arith.xori %32, %true : i1
    %36 = arith.extui %35 : i1 to i32
    %c0_i32_15 = arith.constant 0 : i32
    %37 = arith.cmpi ne, %36, %c0_i32_15 : i32
    scf.if %37 {
      %c16_i32_18 = arith.constant 16 : i32
      %41 = arith.muli %29, %c16_i32_18 : i32
      %42 = tpu.iota {dimensions = array<i32: 0>} : vector<16x1xi32>
      %43 = vector.broadcast %41 : i32 to vector<16x1xi32>
      %44 = arith.addi %43, %42 : vector<16x1xi32>
      %c0_19 = arith.constant 0 : index
      %c0_20 = arith.constant 0 : index
      %45 = vector.load %arg9[%c0_19, %c0_20] : memref<16x32xf32, #tpu.memory_space<vmem>>, vector<16x32xf32>
      %46 = vector.broadcast %27 : i32 to vector<16x1xi32>
      %47 = arith.cmpi slt, %44, %46 : vector<16x1xi32>
      %cst_21 = arith.constant 0.000000e+00 : f32
      %48 = vector.shape_cast %47 : vector<16x1xi1> to vector<16x1xi1>
      %49 = vector.broadcast %48 : vector<16x1xi1> to vector<16x32xi1>
      %50 = vector.broadcast %cst_21 : f32 to vector<16x32xf32>
      %51 = arith.select %49, %26, %50 : vector<16x32xi1>, vector<16x32xf32>
      %52 = arith.addf %45, %51 : vector<16x32xf32>
      %c0_22 = arith.constant 0 : index
      %c0_23 = arith.constant 0 : index
      %53 = vector.load %arg9[%c0_22, %c0_23] : memref<16x32xf32, #tpu.memory_space<vmem>>, vector<16x32xf32>
      tpu.vector_store %arg9[%c0_22, %c0_23], %52 {strides = array<i32>} : memref<16x32xf32, #tpu.memory_space<vmem>>, vector<16x32xf32>,
    } else {
    }
    %c1_i32_16 = arith.constant 1 : i32
    %38 = arith.cmpi eq, %arg1, %c1_i32_16 : i32
    %39 = arith.extui %38 : i1 to i32
    %c0_i32_17 = arith.constant 0 : i32
    %40 = arith.cmpi ne, %39, %c0_i32_17 : i32
    scf.if %40 {
      %c0_18 = arith.constant 0 : index
      %c0_19 = arith.constant 0 : index
      %41 = vector.load %arg9[%c0_18, %c0_19] : memref<16x32xf32, #tpu.memory_space<vmem>>, vector<16x32xf32>
      %cst_20 = arith.constant dense<0.000000e+00> : vector<16xf32>
      %42 = vector.multi_reduction <add>, %41, %cst_20 [1] : vector<16x32xf32> to vector<16xf32>
      %43 = vector.shape_cast %42 : vector<16xf32> to vector<16x1xf32>
      %44 = vector.shape_cast %43 : vector<16x1xf32> to vector<1x16x1xf32>
      %cst_21 = arith.constant dense<0.000000e+00> : vector<1xf32>
      %45 = vector.multi_reduction <add>, %44, %cst_21 [1, 2] : vector<1x16x1xf32> to vector<1xf32>
      %46 = vector.shape_cast %45 : vector<1xf32> to vector<1x1x1xf32>
      %47 = vector.extract %46[0, 0, 0] : f32 from vector<1x1x1xf32>
      %48 = vector.broadcast %47 : f32 to vector<1x8x128xf32>
      %c0_22 = arith.constant 0 : index
      %c0_23 = arith.constant 0 : index
      %c0_24 = arith.constant 0 : index
      %49 = vector.load %arg8[%c0_22, %c0_23, %c0_24] : memref<1x8x128xf32, #tpu.memory_space<vmem>>, vector<1x8x128xf32>
      tpu.vector_store %arg8[%c0_22, %c0_23, %c0_24], %48 {strides = array<i32>} : memref<1x8x128xf32, #tpu.memory_space<vmem>>, vector<1x8x128xf32>,
    } else {
    }
    return
  }
  func.func @transform_0(%arg0: i32, %arg1: i32, %arg2: memref<1xi32, #tpu.memory_space<smem>>) -> (i32, i32) {
    %c2_i32 = arith.constant 2 : i32
    %0 = arith.muli %arg0, %c2_i32 : i32
    %1 = arith.addi %0, %arg1 : i32
    %c0_i32 = arith.constant 0 : i32
    %c0_i32_0 = arith.constant 0 : i32
    return %1, %c0_i32 : i32, i32
  }
  func.func @transform_1(%arg0: i32, %arg1: i32, %arg2: memref<1xi32, #tpu.memory_space<smem>>) -> (i32, i32) {
    %c0_i32 = arith.constant 0 : i32
    %c0_i32_0 = arith.constant 0 : i32
    %c0_i32_1 = arith.constant 0 : i32
    return %c0_i32, %c0_i32_0 : i32, i32
  }
  func.func @transform_2(%arg0: i32, %arg1: i32, %arg2: memref<1xi32, #tpu.memory_space<smem>>) -> (i32, i32) {
    %c0_i32 = arith.constant 0 : i32
    %c0_i32_0 = arith.constant 0 : i32
    %c0_i32_1 = arith.constant 0 : i32
    return %c0_i32, %c0_i32_0 : i32, i32
  }
  func.func @transform_3(%arg0: i32, %arg1: i32, %arg2: memref<1xi32, #tpu.memory_space<smem>>) -> (i32, i32) {
    %c0_i32 = arith.constant 0 : i32
    %c0_i32_0 = arith.constant 0 : i32
    %c0_i32_1 = arith.constant 0 : i32
    return %c0_i32, %c0_i32_0 : i32, i32
  }
  func.func @transform_4(%arg0: i32, %arg1: i32, %arg2: memref<1xi32, #tpu.memory_space<smem>>) -> (i32, i32) {
    %c0_i32 = arith.constant 0 : i32
    %c0_i32_0 = arith.constant 0 : i32
    %c0_i32_1 = arith.constant 0 : i32
    return %c0_i32, %c0_i32_0 : i32, i32
  }
  func.func @transform_5(%arg0: i32, %arg1: i32, %arg2: memref<1xi32, #tpu.memory_space<smem>>) -> (i32, i32, i32) {
    %c0_i32 = arith.constant 0 : i32
    %c0_i32_0 = arith.constant 0 : i32
    %c0_i32_1 = arith.constant 0 : i32
    return %arg0, %c0_i32, %c0_i32_0 : i32, i32, i32
  }
}

</mosaic_0001>

<llo_original>
// kernel: tpu_custom_call.1
$region0: #{tpu_custom_call.1}
  #allocation0 [shape = 'u32[]', space=smem, size = 0x4, offset = 0x4, fixed_abs, tag = 'smem constant byte address 0x4 - core index']
  #allocation1 [shape = 'u32[144,128]{1,0:T(1,128)}', space=vmem, size = 0x12000, scoped, tag = 'internal scratch']
  #allocation2 [shape = 'f32[16,32]{1,0:T(8,128)}', space=vmem, size = 0x2000, scoped, tag = 'scratch operand']
  #allocation3 [shape = 's32[1]{0}', space=sflag, size = 0x4, scoped, tag = 'scoped memory for tpu_custom_call.1']
  #allocation4 [shape = 's32[1]{0:T(128)S(6)}', space=smem, size = 0x200, scoped, tag = 'prefetched SMEM operand 0']
  %s0 = inlined_call_operand.<no memory space> [shape: s32[1], index: 0, kind: input, shape index: {}]
  %s1 = inlined_call_operand.vmem [shape: f32[50,32], index: 1, kind: input, shape index: {}]
  %s2 = inlined_call_operand.vmem [shape: bf16[32,32], index: 2, kind: input, shape index: {}]
  %s3 = inlined_call_operand.vmem [shape: f32[1,32], index: 3, kind: input, shape index: {}]
  %s4 = inlined_call_operand.vmem [shape: bf16[32,64], index: 4, kind: input, shape index: {}]
  %s5 = inlined_call_operand.vmem [shape: f32[1,64], index: 5, kind: input, shape index: {}]
  %s6 = inlined_call_operand.hbm [shape: f32[2,8,128], index: 6, kind: output, shape index: {}]
  %s7 = sld [smem:[#allocation0]]
  $region69: #{tpu_custom_call.1} parent=0
    _
  %s9 = ssub.s32 1, %s7
  %s10 = scalar_select 0, %s9, %s7
  %11 = sst [smem:[#allocation4]] %s0
  $region1: #{tpu_custom_call.1} parent=0
    #allocation5 [shape = 'u8[8192]{0}', space=vmem, size = 0x2000, scoped, tag = 'output window, operand 0']
    #allocation6 [shape = 's32[2]{0}', space=sflag, size = 0x8, scoped, tag = 'scoped memory for tpu_custom_call.1']
    %12 = vsyncpa [#allocation6], 0
    %s13 = scalar_lea.sflag [#allocation6], 1
    %14 = vsyncpa %s13, 0
    loop: start=0, step=1, limit=6
    $region2: #{tpu_custom_call.1} parent=1 // loop_pre_header
      _
    $region3: #{tpu_custom_call.1} parent=1 // loop_header
      %s16 = sphi 0, %s20
      %p17 = scmp.ge.s32.totalorder %s16, 6
      %s23 = sphi 0, %s35
      %s24 = sphi 0, %s31
      %s25 = sphi 0, %s23
      %s26 = sphi 0, %s24
      %s27 = sphi 0, %s25
      %s28 = sphi 0, %s26
      %s42 = sphi 0, %s44
      %s45 = sphi 0, %s42
      %s46 = sphi 0, %s45
      %s62 = sphi 0, %s46
      %s66 = sphi 0, %s66
      %s68 = sphi 0, %s66
      %s69 = sphi 0, %s68
      %s83 = sphi 0, %s69
      %s87 = sphi 0, %s87
      %s89 = sphi 0, %s87
      %s90 = sphi 0, %s89
      %s104 = sphi 0, %s90
      %s108 = sphi 0, %s108
      %s110 = sphi 0, %s108
      %s111 = sphi 0, %s110
      %s125 = sphi 0, %s111
      %s129 = sphi 0, %s129
      %s131 = sphi 0, %s129
      %s132 = sphi 0, %s131
      %s146 = sphi 0, %s132
      %s152 = sphi 0, %s154
      %s155 = sphi 0, %s152
      %s156 = sphi 0, %s155
      %s172 = sphi 0, %s156
    $region4: #{tpu_custom_call.1} parent=1 // loop_header_branch
      %19 = sbr.rel (%p17) target = $region8
    $region5: #{tpu_custom_call.1} parent=1 // loop_body
      %s21 = ssub.s32 %s16, 1
      %s22 = ssub.s32 %s16, 2
      %s29 = sadd.s32 1, %s24
      %p30 = scmp.ge.s32.totalorder %s29, 2
      %s31 = scalar_select %p30, 0, %s29
      %s32 = sadd.s32 1, %s23
      %s33 = scalar_select %p30, %s32, %s23
      %p34 = scmp.ge.s32.totalorder %s33, 2
      %s35 = scalar_select %p34, 0, %s33
      %s36 = smul.u32 %s23, 2
      %s37 = sadd.s32 %s36, %s24
      %s38 = smul.u32 %s35, 2
      %s39 = sadd.s32 %s38, %s31
      %s40 = ssub.s32 %s37, %s39
      %p41 = scmp.eq.s32.totalorder %s40, 0
      %s43 = sadd.s32 %s42, 1
      %s44 = scalar_select %p41, %s42, %s43
      %p47 = pneg %p41
      %p48 = scmp.eq.s32.totalorder %s16, 3
      %p49 = por %p47, %p48
      %p50 = scmp.ne.s32.totalorder %s42, %s45
      %p51 = scmp.eq.s32.totalorder %s16, 0
      %p52 = por %p50, %p51
      %p53 = scmp.ne.s32.totalorder %s42, %s45
      %p54 = scmp.eq.s32.totalorder %s21, 3
      %p55 = por %p53, %p54
      %p56 = scmp.ne.s32.totalorder %s45, %s46
      %p57 = scmp.eq.s32.totalorder %s21, 0
      %p58 = por %p56, %p57
      %p59 = scmp.ne.s32.totalorder %s45, %s46
      %p60 = scmp.eq.s32.totalorder %s22, 3
      %p61 = por %p59, %p60
      %p63 = scmp.ne.s32.totalorder %s46, %s62
      %p64 = scmp.eq.s32.totalorder %s22, 0
      %p65 = por %p63, %p64
      %s67 = sadd.s32 %s66, 1
      %p70 = scmp.eq.s32.totalorder %s16, 3
      %p71 = scmp.ne.s32.totalorder %s66, %s68
      %p72 = scmp.eq.s32.totalorder %s16, 0
      %p73 = por %p71, %p72
      %p74 = scmp.ne.s32.totalorder %s66, %s68
      %p75 = scmp.eq.s32.totalorder %s21, 3
      %p76 = por %p74, %p75
      %p77 = scmp.ne.s32.totalorder %s68, %s69
      %p78 = scmp.eq.s32.totalorder %s21, 0
      %p79 = por %p77, %p78
      %p80 = scmp.ne.s32.totalorder %s68, %s69
      %p81 = scmp.eq.s32.totalorder %s22, 3
      %p82 = por %p80, %p81
      %p84 = scmp.ne.s32.totalorder %s69, %s83
      %p85 = scmp.eq.s32.totalorder %s22, 0
      %p86 = por %p84, %p85
      %s88 = sadd.s32 %s87, 1
      %p91 = scmp.eq.s32.totalorder %s16, 3
      %p92 = scmp.ne.s32.totalorder %s87, %s89
      %p93 = scmp.eq.s32.totalorder %s16, 0
      %p94 = por %p92, %p93
      %p95 = scmp.ne.s32.totalorder %s87, %s89
      %p96 = scmp.eq.s32.totalorder %s21, 3
      %p97 = por %p95, %p96
      %p98 = scmp.ne.s32.totalorder %s89, %s90
      %p99 = scmp.eq.s32.totalorder %s21, 0
      %p100 = por %p98, %p99
      %p101 = scmp.ne.s32.totalorder %s89, %s90
      %p102 = scmp.eq.s32.totalorder %s22, 3
      %p103 = por %p101, %p102
      %p105 = scmp.ne.s32.totalorder %s90, %s104
      %p106 = scmp.eq.s32.totalorder %s22, 0
      %p107 = por %p105, %p106
      %s109 = sadd.s32 %s108, 1
      %p112 = scmp.eq.s32.totalorder %s16, 3
      %p113 = scmp.ne.s32.totalorder %s108, %s110
      %p114 = scmp.eq.s32.totalorder %s16, 0
      %p115 = por %p113, %p114
      %p116 = scmp.ne.s32.totalorder %s108, %s110
      %p117 = scmp.eq.s32.totalorder %s21, 3
      %p118 = por %p116, %p117
      %p119 = scmp.ne.s32.totalorder %s110, %s111
      %p120 = scmp.eq.s32.totalorder %s21, 0
      %p121 = por %p119, %p120
      %p122 = scmp.ne.s32.totalorder %s110, %s111
      %p123 = scmp.eq.s32.totalorder %s22, 3
      %p124 = por %p122, %p123
      %p126 = scmp.ne.s32.totalorder %s111, %s125
      %p127 = scmp.eq.s32.totalorder %s22, 0
      %p128 = por %p126, %p127
      %s130 = sadd.s32 %s129, 1
      %p133 = scmp.eq.s32.totalorder %s16, 3
      %p134 = scmp.ne.s32.totalorder %s129, %s131
      %p135 = scmp.eq.s32.totalorder %s16, 0
      %p136 = por %p134, %p135
      %p137 = scmp.ne.s32.totalorder %s129, %s131
      %p138 = scmp.eq.s32.totalorder %s21, 3
      %p139 = por %p137, %p138
      %p140 = scmp.ne.s32.totalorder %s131, %s132
      %p141 = scmp.eq.s32.totalorder %s21, 0
      %p142 = por %p140, %p141
      %p143 = scmp.ne.s32.totalorder %s131, %s132
      %p144 = scmp.eq.s32.totalorder %s22, 3
      %p145 = por %p143, %p144
      %p147 = scmp.ne.s32.totalorder %s132, %s146
      %p148 = scmp.eq.s32.totalorder %s22, 0
      %p149 = por %p147, %p148
      %s150 = ssub.s32 %s23, %s35
      %p151 = scmp.eq.s32.totalorder %s150, 0
      %s153 = sadd.s32 %s152, 1
      %s154 = scalar_select %p151, %s152, %s153
      %p157 = pneg %p151
      %p158 = scmp.eq.s32.totalorder %s16, 3
      %p159 = por %p157, %p158
      %p160 = scmp.ne.s32.totalorder %s152, %s155
      %p161 = scmp.eq.s32.totalorder %s16, 0
      %p162 = por %p160, %p161
      %p163 = scmp.ne.s32.totalorder %s152, %s155
      %p164 = scmp.eq.s32.totalorder %s21, 3
      %p165 = por %p163, %p164
      %p166 = scmp.ne.s32.totalorder %s155, %s156
      %p167 = scmp.eq.s32.totalorder %s21, 0
      %p168 = por %p166, %p167
      %p169 = scmp.ne.s32.totalorder %s155, %s156
      %p170 = scmp.eq.s32.totalorder %s22, 3
      %p171 = por %p169, %p170
      %p173 = scmp.ne.s32.totalorder %s156, %s172
      %p174 = scmp.eq.s32.totalorder %s22, 0
      %p175 = por %p173, %p174
      %p176 = scmp.le.s32.totalorder 1, %s16
      %p177 = scmp.lt.s32.totalorder %s16, 5
      %p178 = pnand %p176, %p177
      %p179 = pneg %p178
      // Predicated region
      $region9: #{tpu_custom_call.1} parent=5 // pred_check
        _
      $region10: #{tpu_custom_call.1} parent=5 // pred_check_branch
        %181 = sbr.rel (%p178) target = $region12
      $region11: #{tpu_custom_call.1} parent=5 // pred_region
        %s182 = ssub.s32 %s16, 1
        // Predicated region
        $region13: #{tpu_custom_call.1} parent=11 // pred_check
          %p183 = pneg %p79
        $region14: #{tpu_custom_call.1} parent=11 // pred_check_branch
          %185 = sbr.rel (%p183) target = $region16
        $region15: #{tpu_custom_call.1} parent=11 // pred_region
          _
        $region16: #{tpu_custom_call.1} parent=11 // pred_fallthru
          _
        // Predicated region
        $region17: #{tpu_custom_call.1} parent=11 // pred_check
          %p186 = pneg %p100
        $region18: #{tpu_custom_call.1} parent=11 // pred_check_branch
          %188 = sbr.rel (%p186) target = $region20
        $region19: #{tpu_custom_call.1} parent=11 // pred_region
          _
        $region20: #{tpu_custom_call.1} parent=11 // pred_fallthru
          _
        // Predicated region
        $region21: #{tpu_custom_call.1} parent=11 // pred_check
          %p189 = pneg %p121
        $region22: #{tpu_custom_call.1} parent=11 // pred_check_branch
          %191 = sbr.rel (%p189) target = $region24
        $region23: #{tpu_custom_call.1} parent=11 // pred_region
          _
        $region24: #{tpu_custom_call.1} parent=11 // pred_fallthru
          _
        // Predicated region
        $region25: #{tpu_custom_call.1} parent=11 // pred_check
          %p192 = pneg %p142
        $region26: #{tpu_custom_call.1} parent=11 // pred_check_branch
          %194 = sbr.rel (%p192) target = $region28
        $region27: #{tpu_custom_call.1} parent=11 // pred_region
          _
        $region28: #{tpu_custom_call.1} parent=11 // pred_fallthru
          _
      $region12: #{tpu_custom_call.1} parent=5 // pred_fallthru
        _
      %p195 = scmp.lt.s32.totalorder %s16, 4
      // Predicated region
      $region29: #{tpu_custom_call.1} parent=5 // pred_check
        %p196 = pneg %p195
      $region30: #{tpu_custom_call.1} parent=5 // pred_check_branch
        %198 = sbr.rel (%p196) target = $region32
      $region31: #{tpu_custom_call.1} parent=5 // pred_region
        // Predicated region
        $region33: #{tpu_custom_call.1} parent=31 // pred_check
          %p199 = pneg %p52
        $region34: #{tpu_custom_call.1} parent=31 // pred_check_branch
          %201 = sbr.rel (%p199) target = $region36
        $region35: #{tpu_custom_call.1} parent=31 // pred_region
          %s202 = smul.u32 %s23, 2
          %s203 = sadd.s32 %s202, %s24
          %s204 = smul.u32 2, %s203
          %s205 = ssub.s32 7, %s204
          %p206 = scmp.lt.s32.totalorder %s205, 2
          %s207 = scalar_select %p206, %s205, 2
          %s208 = smul.u32 128, %s207
          %p209 = scmp.lt.s32.totalorder %s204, 6
          %s210 = scalar_select %p209, %s204, 6
          %s211 = smul.addr %s210, 8
          %s212 = scalar_lea.vmem %s1, %s211
          %s213 = smul.u32 %s23, 2
          %s214 = sadd.s32 %s213, %s24
          %s215 = smul.u32 2, %s214
          %s216 = ssub.s32 7, %s215
          %p217 = scmp.lt.s32.totalorder %s216, 2
          %s218 = scalar_select %p217, %s216, 2
          %s219 = smul.u32 128, %s218
        $region36: #{tpu_custom_call.1} parent=31 // pred_fallthru
          _
      $region32: #{tpu_custom_call.1} parent=5 // pred_fallthru
        _
      %p220 = scmp.le.s32.totalorder 1, %s16
      %p221 = scmp.lt.s32.totalorder %s16, 5
      %p222 = pnand %p220, %p221
      %p223 = pneg %p222
      // Predicated region
      $region37: #{tpu_custom_call.1} parent=5 // pred_check
        _
      $region38: #{tpu_custom_call.1} parent=5 // pred_check_branch
        %225 = sbr.rel (%p222) target = $region40
      $region39: #{tpu_custom_call.1} parent=5 // pred_region
        %s226 = ssub.s32 %s16, 1
        %s227 = smul.u32 %s25, 2
        %s228 = sadd.s32 %s227, %s26
        %s229 = smul.u32 2, %s228
        %s230 = ssub.s32 7, %s229
        %p231 = scmp.lt.s32.totalorder %s230, 2
        %s232 = scalar_select %p231, %s230, 2
        %s233 = smul.u32 128, %s232
        %p234 = scmp.lt.s32.totalorder %s229, 6
        %s235 = scalar_select %p234, %s229, 6
        %s236 = smul.addr %s235, 8
        %s237 = scalar_lea.vmem %s1, %s236
        %p238 = pneg %p58
        %p239 = pneg %p55
        %p240 = pneg %p79
        %p241 = pneg %p76
        %p242 = pneg %p100
        %p243 = pneg %p97
        %p244 = pneg %p121
        %p245 = pneg %p118
        %p246 = pneg %p142
        %p247 = pneg %p139
        %p248 = pneg %p168
        %p249 = pneg %p165
        %s250 = sand.u32 %s155, 1
        %s251 = scalar_lea.sflag [#allocation6], %s250
        %s252 = sand.u32 %s155, 1
        %s253 = smul.addr %s252, 8
        %s254 = scalar_lea.vmem [#allocation5], %s253
        %s255 = smul.u32 %s25, 2
        %s256 = sadd.s32 %s255, %s26
        %s257 = smul.u32 2, %s256
        %s258 = ssub.s32 7, %s257
        %p259 = scmp.lt.s32.totalorder %s258, 2
        %s260 = scalar_select %p259, %s258, 2
        %s261 = smul.u32 128, %s260
        %p262 = scmp.lt.s32.totalorder %s257, 6
        %s263 = scalar_select %p262, %s257, 6
        %s264 = smul.addr %s263, 8
        %s265 = scalar_lea.vmem %s1, %s264
        %s266 = smul.u32 %s25, 2
        %s267 = sadd.s32 %s266, %s26
        %s268 = smul.u32 2, %s267
        %s269 = ssub.s32 7, %s268
        %p270 = scmp.lt.s32.totalorder %s269, 2
        %s271 = scalar_select %p270, %s269, 2
        %s272 = smul.u32 128, %s271
        %p274 = scmp.eq.s32.totalorder %s26, 0
        // Predicated region
        $region41: #{tpu_custom_call.1} parent=39 // pred_check
          %p275 = pneg %p274
        $region42: #{tpu_custom_call.1} parent=39 // pred_check_branch
          %277 = sbr.rel (%p275) target = $region44
        $region43: #{tpu_custom_call.1} parent=39 // pred_region
          %vm278 = vcmask 261120
          %279 = vst.msk [vmem:[#allocation2] sm:$0xff] %vm278, 0.0
          %280 = vst.msk [vmem:[#allocation2 + $0x8] sm:$0xff] %vm278, 0.0
        $region44: #{tpu_custom_call.1} parent=39 // pred_fallthru
          _
        %v281 = vld [vmem:[%s265] sm:$0xff]
        %v282 = vld [vmem:[%s265 + $0x8] sm:$0xff]
        %v283 = vpack.c.bf16 %v282, %v281
        %v284 = vld [vmem:[%s2] sm:$0xf]
        %v285 = vld [vmem:[%s2 + $0x4] sm:$0xf]
        %v286 = vld [vmem:[%s2 + $0x8] sm:$0xf]
        %v287 = vld [vmem:[%s2 + $0xc] sm:$0xf]
        %v288 = vld [vmem:[%s3] sm:$0x1]
        %v290 = vlaneseq
        %v291 = vshrl.u32 %v290, 7
        %v292 = vsub.s32 0, %v291
        %v293 = vrot.slane %v288, %v292
        %v299 = vunpack.c.l.b16 %v284
        %v300 = vunpack.c.l.b16 %v285
        %v301 = vunpack.c.l.b16 %v286
        %v302 = vunpack.c.l.b16 %v287
        %v303 = vpack.c.b16 %v300, %v299
        %v304 = vpack.c.b16 %v302, %v301
        %vm307 = vcmask 261120
        %v309 = vsel %vm307, %v283, 0
        %311 = vmatprep.subr.bf16.mxu0 0
        %312 = vmatpush1.bf16.msra.mxu0 %v303
        %313 = vmatprep.subr.bf16.mxu0 0
        %314 = vmatpush1.bf16.msra.mxu0 %v304
        %315 = vmatprep.subr.bf16.mxu0 0
        %316 = vmatpush1.bf16.msra.mxu0 0
        %317 = vmatprep.subr.bf16.mxu0 0
        %318 = vmatpush1.bf16.msra.mxu0 0
        %319 = vmatprep.subr.bf16.mxu0 0
        %320 = vmatpush1.bf16.msra.mxu0 0
        %321 = vmatprep.subr.bf16.mxu0 0
        %322 = vmatpush1.bf16.msra.mxu0 0
        %323 = vmatprep.subr.bf16.mxu0 0
        %324 = vmatpush1.bf16.msra.mxu0 0
        %325 = vmatprep.subr.bf16.mxu0 0
        %326 = vmatpush1.bf16.msra.mxu0 0
        %327 = vmatprep.subr.bf16.mxu0 0
        %328 = vmatpush1.bf16.msra.mxu0 0
        %329 = vmatprep.subr.bf16.mxu0 0
        %330 = vmatpush1.bf16.msra.mxu0 0
        %331 = vmatprep.subr.bf16.mxu0 0
        %332 = vmatpush1.bf16.msra.mxu0 0
        %333 = vmatprep.subr.bf16.mxu0 0
        %334 = vmatpush1.bf16.msra.mxu0 0
        %335 = vmatprep.subr.bf16.mxu0 0
        %336 = vmatpush1.bf16.msra.mxu0 0
        %337 = vmatprep.subr.bf16.mxu0 0
        %338 = vmatpush1.bf16.msra.mxu0 0
        %339 = vmatprep.subr.bf16.mxu0 0
        %340 = vmatpush1.bf16.msra.mxu0 0
        %341 = vmatprep.subr.bf16.mxu0 0
        %342 = vmatpush1.bf16.msra.mxu0 0
        %343 = vmatprep.mubr.bf16.mxu0 0
        %344 = vmatmul.mubr.bf16.gmra.mrb[0].mxu0 %v309
        %v345 = vpop.f32.mrb[0].mxu0
        %v346 = vadd.f32 %v293, %v345
        %v347 = vpop.f32.mrb[0].mxu0
        %v348 = vpop.f32.mrb[0].mxu0
        %v349 = vadd.f32 %v293, %v348
        %v350 = vpop.f32.mrb[0].mxu0
        %351 = vdwg.mxu0
        %v352 = vmax.f32 %v346, 0.0
        %v353 = vmax.f32 %v349, 0.0
        %v354 = vpack.c.bf16 %v353, %v352
        %v355 = vld [vmem:[%s4] sm:$0xf]
        %v356 = vld [vmem:[%s4 + $0x4] sm:$0xf]
        %v357 = vld [vmem:[%s4 + $0x8] sm:$0xf]
        %v358 = vld [vmem:[%s4 + $0xc] sm:$0xf]
        %v359 = vld [vmem:[%s5] sm:$0x1]
        %v361 = vlaneseq
        %v362 = vshrl.u32 %v361, 7
        %v363 = vsub.s32 0, %v362
        %v364 = vrot.slane %v359, %v363
        %v370 = vunpack.c.l.b16 %v355
        %v371 = vunpack.c.l.b16 %v356
        %v372 = vunpack.c.l.b16 %v357
        %v373 = vunpack.c.l.b16 %v358
        %v374 = vpack.c.b16 %v371, %v370
        %v375 = vpack.c.b16 %v373, %v372
        %v379 = vsel %vm307, %v354, 0
        %381 = vmatprep.subr.bf16.mxu0 0
        %382 = vmatpush1.bf16.msra.mxu0 %v374
        %383 = vmatprep.subr.bf16.mxu0 0
        %384 = vmatpush1.bf16.msra.mxu0 %v375
        %385 = vmatprep.subr.bf16.mxu0 0
        %386 = vmatpush1.bf16.msra.mxu0 0
        %387 = vmatprep.subr.bf16.mxu0 0
        %388 = vmatpush1.bf16.msra.mxu0 0
        %389 = vmatprep.subr.bf16.mxu0 0
        %390 = vmatpush1.bf16.msra.mxu0 0
        %391 = vmatprep.subr.bf16.mxu0 0
        %392 = vmatpush1.bf16.msra.mxu0 0
        %393 = vmatprep.subr.bf16.mxu0 0
        %394 = vmatpush1.bf16.msra.mxu0 0
        %395 = vmatprep.subr.bf16.mxu0 0
        %396 = vmatpush1.bf16.msra.mxu0 0
        %397 = vmatprep.subr.bf16.mxu0 0
        %398 = vmatpush1.bf16.msra.mxu0 0
        %399 = vmatprep.subr.bf16.mxu0 0
        %400 = vmatpush1.bf16.msra.mxu0 0
        %401 = vmatprep.subr.bf16.mxu0 0
        %402 = vmatpush1.bf16.msra.mxu0 0
        %403 = vmatprep.subr.bf16.mxu0 0
        %404 = vmatpush1.bf16.msra.mxu0 0
        %405 = vmatprep.subr.bf16.mxu0 0
        %406 = vmatpush1.bf16.msra.mxu0 0
        %407 = vmatprep.subr.bf16.mxu0 0
        %408 = vmatpush1.bf16.msra.mxu0 0
        %409 = vmatprep.subr.bf16.mxu0 0
        %410 = vmatpush1.bf16.msra.mxu0 0
        %411 = vmatprep.subr.bf16.mxu0 0
        %412 = vmatpush1.bf16.msra.mxu0 0
        %413 = vmatprep.mubr.bf16.mxu0 0
        %414 = vmatmul.mubr.bf16.gmra.mrb[0].mxu0 %v379
        %v415 = vpop.f32.mrb[0].mxu0
        %v416 = vadd.f32 %v364, %v415
        %v417 = vpop.f32.mrb[0].mxu0
        %v418 = vpop.f32.mrb[0].mxu0
        %v419 = vadd.f32 %v364, %v418
        %v420 = vpop.f32.mrb[0].mxu0
        %421 = vdwg.mxu0
        %v422 = vtanh.pop %v416
        %v423 = vtanh.pop %v419
        %v424 = vmul.f32 %v416, %v416
        %v425 = vmul.f32 %v419, %v419
        %v426 = vmul.f32 %v422, 1.442695
        %v427 = vpow.pop %v426
        %v428 = vmul.f32 %v423, 1.442695
        %v429 = vpow.pop %v428
        %432 = vrot.lane.b32.xlu0 %v427, 96
        %v433 = vpop.permute.xlu0 %432
        %434 = vrot.lane.b32.xlu0 %v429, 96
        %v435 = vpop.permute.xlu0 %434
        %v438 = vadd.f32 %v424, %v433
        %v439 = vadd.f32 %v425, %v435
        %v440 = vsub.f32 %v438, 1.0
        %v441 = vsub.f32 %v439, 1.0
        %444 = vrot.lane.b32.xlu0 %v422, 96
        %v445 = vpop.permute.xlu0 %444
        %446 = vrot.lane.b32.xlu0 %v423, 96
        %v447 = vpop.permute.xlu0 %446
        %v450 = vsub.f32 %v440, %v445
        %v451 = vsub.f32 %v441, %v447
        %s452 = sld [smem:[#allocation4]]
        %s453 = smul.u32 %s25, 2
        %s454 = sadd.s32 %s453, %s26
        %s455 = sadd.s32 %s454, 1
        %s456 = smul.u32 %s455, 16
        %p457 = scmp.le.s32.totalorder %s456, %s452
        // Predicated region
        $region45: #{tpu_custom_call.1} parent=39 // pred_check
          %p458 = pneg %p457
        $region46: #{tpu_custom_call.1} parent=39 // pred_check_branch
          %460 = sbr.rel (%p458) target = $region48
        $region47: #{tpu_custom_call.1} parent=39 // pred_region
          %v461 = vld [vmem:[#allocation2] sm:$0xff]
          %v462 = vld [vmem:[#allocation2 + $0x8] sm:$0xff]
          %v463 = vadd.f32 %v461, %v450
          %v464 = vadd.f32 %v462, %v451
          %465 = vst.msk [vmem:[#allocation2] sm:$0xff] %vm307, %v463
          %466 = vst.msk [vmem:[#allocation2 + $0x8] sm:$0xff] %vm307, %v464
        $region48: #{tpu_custom_call.1} parent=39 // pred_fallthru
          _
        %p467 = scmp.gt.s32.totalorder %s456, %s452
        // Predicated region
        $region49: #{tpu_custom_call.1} parent=39 // pred_check
          %p468 = pneg %p467
        $region50: #{tpu_custom_call.1} parent=39 // pred_check_branch
          %470 = sbr.rel (%p468) target = $region52
        $region51: #{tpu_custom_call.1} parent=39 // pred_region
          %s471 = smul.u32 %s454, 16
          %v472 = vlaneseq
          %v473 = vshrl.u32 %v472, 7
          %v474 = vadd.s32 %v473, 8
          %v475 = vstv %s471
          %v476 = vadd.s32 %v475, %v473
          %v477 = vadd.s32 %v475, %v474
          %v478 = vld [vmem:[#allocation2] sm:$0xff]
          %v479 = vld [vmem:[#allocation2 + $0x8] sm:$0xff]
          %v480 = vstv %s452
          %vm481 = vcmp.lt.s32.totalorder %v476, %v480
          %vm482 = vcmp.lt.s32.totalorder %v477, %v480
          %v483 = vsel %vm481, 1, 0
          %v484 = vsel %vm482, 1, 0
          %vm485 = vcmp.eq.s32.totalorder %v483, 1
          %vm486 = vcmp.eq.s32.totalorder %v484, 1
          %v487 = vsel %vm485, %v450, 0.0
          %v488 = vsel %vm486, %v451, 0.0
          %v489 = vadd.f32 %v478, %v487
          %v490 = vadd.f32 %v479, %v488
          %491 = vst.msk [vmem:[#allocation2] sm:$0xff] %vm307, %v489
          %492 = vst.msk [vmem:[#allocation2 + $0x8] sm:$0xff] %vm307, %v490
        $region52: #{tpu_custom_call.1} parent=39 // pred_fallthru
          _
        %p493 = scmp.eq.s32.totalorder %s26, 1
        // Predicated region
        $region53: #{tpu_custom_call.1} parent=39 // pred_check
          %p494 = pneg %p493
        $region54: #{tpu_custom_call.1} parent=39 // pred_check_branch
          %496 = sbr.rel (%p494) target = $region56
        $region55: #{tpu_custom_call.1} parent=39 // pred_region
          %v497 = vld [vmem:[#allocation2] sm:$0xff]
          %v498 = vld [vmem:[#allocation2 + $0x8] sm:$0xff]
          %v499 = vsel %vm307, %v497, 0.0
          %500 = vadd.xlane.f32.xlu0 %v499
          %v501 = vpop.xlane.xlu0 %500
          %v502 = vsel %vm307, %v498, 0.0
          %503 = vadd.xlane.f32.xlu0 %v502
          %v504 = vpop.xlane.xlu0 %503
          %vm505 = vcmask 7168
          %v506 = vsel %vm505, %v501, 0.0
          %v507 = vsel %vm505, %v504, 0.0
          %v508 = vadd.f32 %v506, %v507
          %509 = vadd.xlane.f32.xlu0 %v508
          %v510 = vpop.xlane.xlu0 %509
          %v511 = vrot.slane %v510, 4
          %v512 = vadd.f32 %v510, %v511
          %v513 = vrot.slane %v512, 2
          %v514 = vadd.f32 %v512, %v513
          %v515 = vrot.slane %v514, 1
          %v516 = vadd.f32 %v514, %v515
          %s517 = vtos %v516
          %v518 = vstv %s517
          %519 = vst [vmem:[%s254] sm:$0xff] %v518
        $region56: #{tpu_custom_call.1} parent=39 // pred_fallthru
          _
        %s520 = sand.u32 %s155, 1
        %s521 = scalar_lea.sflag [#allocation6], %s520
        %s522 = sand.u32 %s155, 1
        %s523 = smul.addr %s522, 8
        %s524 = scalar_lea.vmem [#allocation5], %s523
        // Predicated region
        $region57: #{tpu_custom_call.1} parent=39 // pred_check
          %p525 = pneg %p165
        $region58: #{tpu_custom_call.1} parent=39 // pred_check_branch
          %527 = sbr.rel (%p525) target = $region60
        $region59: #{tpu_custom_call.1} parent=39 // pred_region
          %s529 = ssub.s32 128, 128
          %530 = vsyncadd %s521, %s529
          %s531 = smul.addr %s25, 128
          %s532 = scalar_lea.hbm %s6, %s531
          %s534 = sshll.u32 %s524, 4
          %s535 = int_to_ptr.vmem [resolvable:$true] %s534
          %537 = dma.vmem_to_hbm [thread:$0]  %s535, 128, %s532, %s521
        $region60: #{tpu_custom_call.1} parent=39 // pred_fallthru
          _
      $region40: #{tpu_custom_call.1} parent=5 // pred_fallthru
        _
      %p538 = scmp.le.s32.totalorder 2, %s16
      // Predicated region
      $region61: #{tpu_custom_call.1} parent=5 // pred_check
        %p539 = pneg %p538
      $region62: #{tpu_custom_call.1} parent=5 // pred_check_branch
        %541 = sbr.rel (%p539) target = $region64
      $region63: #{tpu_custom_call.1} parent=5 // pred_region
        %s542 = ssub.s32 %s16, 2
        // Predicated region
        $region65: #{tpu_custom_call.1} parent=63 // pred_check
          %p543 = pneg %p171
        $region66: #{tpu_custom_call.1} parent=63 // pred_check_branch
          %545 = sbr.rel (%p543) target = $region68
        $region67: #{tpu_custom_call.1} parent=63 // pred_region
          %s546 = sand.u32 %s156, 1
          %s547 = scalar_lea.sflag [#allocation6], %s546
          %s548 = sand.u32 %s156, 1
          %s549 = smul.addr %s548, 8
          %s550 = scalar_lea.vmem [#allocation5], %s549
          %551 = dma.done %s547, 128
        $region68: #{tpu_custom_call.1} parent=63 // pred_fallthru
          _
      $region64: #{tpu_custom_call.1} parent=5 // pred_fallthru
        _
    $region6: #{tpu_custom_call.1} parent=1 // loop_footer
      %s20 = sadd.s32 1, %s16
    $region7: #{tpu_custom_call.1} parent=1 // loop_footer_branch
      %15 = sbr.rel target = $region3
    $region8: #{tpu_custom_call.1} parent=1 // loop_exit
      _
    %552 = vsyncpa [#allocation6], 1
    %s553 = scalar_lea.sflag [#allocation6], 1
    %554 = vsyncpa %s553, 1

</llo_original>
